<compile_context>
chip_gen: v6e
topology: v6e:2x2x1
jax: 0.10.0
libtpu: 0.0.40
codegen_flags: <defaults>
</compile_context>

<pallas_src>
import functools

import jax
import jax.numpy as jnp
from jax.experimental import pallas as pl
from jax.experimental.pallas import tpu as pltpu

_MM_DTYPE = jnp.bfloat16          # MXU operand dtype (accumulation stays f32)
_MAX_TILE_P = 16384               # lane tile over positions (multiple of 128)
_VMEM_LIMIT_BYTES = 32 * 1024 * 1024   # safe on v5e/v6e/v7x
_BN_EPS = 1e-5
_LRELU_SLOPE = 0.2


def _round_up(x, m):
    return ((x + m - 1) // m) * m


# ----------------------------------------------------------------------------
# Fused kernel: conv-as-matmul (lane-dense) + global BN stats + normalize +
# LeakyReLU, single pallas_call.  Output block [Cout, P_pad] is VMEM-resident
# across the whole P-tile grid (index map always (0, 0)); per-tile raw conv
# results are written into it with a dynamic lane slice, and the final tile
# normalizes the whole buffer in place before the single HBM writeback.
# ----------------------------------------------------------------------------
def _fused_conv_bn_lrelu_kernel(p_ref, w_ref, g_ref, bt_ref,   # inputs
                                o_ref,                         # resident output
                                s_ref, ss_ref,                 # VMEM scratch
                                *, tile_p, inv_p):
    t = pl.program_id(0)

    @pl.when(t == 0)
    def _():
        s_ref[...] = jnp.zeros_like(s_ref)
        ss_ref[...] = jnp.zeros_like(ss_ref)

    # Conv as MXU matmul, bf16 operands, f32 accumulation: [Cout, tile_p].
    y = jnp.dot(w_ref[...], p_ref[...], preferred_element_type=jnp.float32)

    off = pl.multiple_of(t * tile_p, 128)
    o_ref[:, pl.ds(off, tile_p)] = y            # lane-dense store into resident y

    # Global BN statistics.  No lane mask: zero-padded patch columns yield
    # y == 0 and contribute exactly 0 to both accumulators.
    s_ref[...] += jnp.sum(y, axis=1, keepdims=True)        # lane reduce (XLU)
    ss_ref[...] += jnp.sum(y * y, axis=1, keepdims=True)

    @pl.when(t == pl.num_programs(0) - 1)
    def _():
        mean = s_ref[...] * inv_p
        var = jnp.maximum(ss_ref[...] * inv_p - mean * mean, 0.0)  # biased var
        scale = g_ref[...] * jax.lax.rsqrt(var + _BN_EPS)          # EUP rsqrt
        shift = bt_ref[...] - mean * scale
        z = o_ref[...] * scale + shift                             # fused BN
        o_ref[...] = jnp.where(z >= 0, z, _LRELU_SLOPE * z)        # LeakyReLU


def _fused_conv_bn_lrelu_call(patches_t, w_mat, gamma, beta, *, p_valid, tile_p):
    k_dim, p_pad = patches_t.shape
    c_out = w_mat.shape[0]
    n_tiles = p_pad // tile_p
    kernel = functools.partial(_fused_conv_bn_lrelu_kernel,
                               tile_p=tile_p, inv_p=1.0 / float(p_valid))
    return pl.pallas_call(
        kernel,
        out_shape=jax.ShapeDtypeStruct((c_out, p_pad), jnp.float32),
        grid_spec=pltpu.PrefetchScalarGridSpec(
            num_scalar_prefetch=0,
            grid=(n_tiles,),
            in_specs=[
                pl.BlockSpec((k_dim, tile_p), lambda t: (0, t)),
                pl.BlockSpec((c_out, k_dim), lambda t: (0, 0)),
                pl.BlockSpec((c_out, 1), lambda t: (0, 0)),
                pl.BlockSpec((c_out, 1), lambda t: (0, 0)),
            ],
            # Whole y stays resident in VMEM across the grid (revisited block),
            # flushed to HBM once, already normalized + activated.
            out_specs=pl.BlockSpec((c_out, p_pad), lambda t: (0, 0)),
            scratch_shapes=[
                pltpu.VMEM((c_out, 1), jnp.float32),   # sum
                pltpu.VMEM((c_out, 1), jnp.float32),   # sum of squares
            ],
        ),
        compiler_params=pltpu.CompilerParams(
            dimension_semantics=("arbitrary",),        # resident out + stats
            vmem_limit_bytes=_VMEM_LIMIT_BYTES),
    )(patches_t, w_mat, gamma, beta)


# ----------------------------------------------------------------------------
# JAX-side layout glue (reflection pad, channel-major transposed im2col).
# ----------------------------------------------------------------------------
def _im2col_t_cmajor(x, kh, kw, stride):
    # x: [C, N, Hp, Wp]  ->  patches_T: [C*kh*kw, N*OH*OW]
    # Row order c*(kh*kw) + i*kw + j matches weight.reshape(Cout, Cin*kh*kw);
    # column order n*OH*OW + oy*OW + ox matches the output reshape below.
    c, n, h, w = x.shape
    oh = (h - kh) // stride + 1
    ow = (w - kw) // stride + 1
    cols = [x[:, :, i:i + stride * oh:stride, j:j + stride * ow:stride]
            for i in range(kh) for j in range(kw)]
    p = jnp.stack(cols, axis=1)                  # [C, kh*kw, N, OH, OW]
    return p.reshape(c * kh * kw, n * oh * ow), oh, ow


def conv_bn_lrelu_block(x_cm, weight, gamma, beta, *, stride, pad):
    # x_cm: [Cin, N, H, W] (channel-major); weight: [Cout, Cin, kh, kw].
    # NOTE: conv bias intentionally not applied — it cancels exactly under
    # training-mode BatchNorm mean subtraction.
    c_out, c_in, kh, kw = weight.shape
    n = x_cm.shape[1]
    xp = jnp.pad(x_cm, ((0, 0), (0, 0), (pad, pad), (pad, pad)), mode="reflect")
    patches_t, oh, ow = _im2col_t_cmajor(xp, kh, kw, stride)
    p_valid = patches_t.shape[1]

    tile_p = min(_MAX_TILE_P, _round_up(p_valid, 128))
    p_pad = _round_up(p_valid, tile_p)
    patches_t = jnp.pad(patches_t, ((0, 0), (0, p_pad - p_valid)))

    w_mat = weight.reshape(c_out, c_in * kh * kw)

    out = _fused_conv_bn_lrelu_call(
        patches_t.astype(_MM_DTYPE),
        w_mat.astype(_MM_DTYPE),
        gamma.reshape(c_out, 1).astype(jnp.float32),
        beta.reshape(c_out, 1).astype(jnp.float32),
        p_valid=p_valid, tile_p=tile_p)

    # Stay channel-major [Cout, N, OH, OW] — next block consumes it directly.
    return out[:, :p_valid].reshape(c_out, n, oh, ow)


def encoder_unit_forward(x, params):
    # x: [N, Cin, H, W] (NCHW, PyTorch layout).
    h = x.transpose(1, 0, 2, 3)                         # -> channel-major
    h = conv_bn_lrelu_block(h, params["w1"], params["g1"], params["beta1"],
                            stride=2, pad=1)
    h = conv_bn_lrelu_block(h, params["w2"], params["g2"], params["beta2"],
                            stride=1, pad=1)
    return h.transpose(1, 0, 2, 3)                      # -> NCHW


# ----------------------------------------------------------------------------
# Pure-JAX reference (mirrors the PyTorch module, training-mode BN, with bias)
# used only for the correctness check in __main__.
# ----------------------------------------------------------------------------
def _ref_forward(x, params):
    def block(x, w, b, g, beta, stride, pad):
        xp = jnp.pad(x, ((0, 0), (0, 0), (pad, pad), (pad, pad)), mode="reflect")
        y = jax.lax.conv_general_dilated(
            xp, w, window_strides=(stride, stride), padding="VALID",
            dimension_numbers=("NCHW", "OIHW", "NCHW"))
        y = y + b.reshape(1, -1, 1, 1)
        mean = y.mean(axis=(0, 2, 3), keepdims=True)
        var = y.var(axis=(0, 2, 3), keepdims=True)       # biased, like PyTorch BN
        y = (y - mean) * jax.lax.rsqrt(var + _BN_EPS)
        y = y * g.reshape(1, -1, 1, 1) + beta.reshape(1, -1, 1, 1)
        return jnp.where(y >= 0, y, _LRELU_SLOPE * y)
    x = block(x, params["w1"], params["b1"], params["g1"], params["beta1"], 2, 1)
    x = block(x, params["w2"], params["b2"], params["g2"], params["beta2"], 1, 1)
    return x


def init_params(key, c1_in=4, c1_out=8, c2_in=8, c2_out=8, k=3):
    ks = jax.random.split(key, 4)
    return {
        "w1": 0.1 * jax.random.normal(ks[0], (c1_out, c1_in, k, k), jnp.float32),
        # Conv biases kept for parity with nn.Conv2d but not applied in the
        # kernel: they cancel exactly under training-mode BatchNorm.
        "b1": 0.1 * jax.random.normal(ks[1], (c1_out,), jnp.float32),
        "g1": jnp.ones((c1_out,), jnp.float32),          # PyTorch BN defaults
        "beta1": jnp.zeros((c1_out,), jnp.float32),
        "w2": 0.1 * jax.random.normal(ks[2], (c2_out, c2_in, k, k), jnp.float32),
        "b2": 0.1 * jax.random.normal(ks[3], (c2_out,), jnp.float32),
        "g2": jnp.ones((c2_out,), jnp.float32),
        "beta2": jnp.zeros((c2_out,), jnp.float32),
    }


if __name__ == "__main__":
    key = jax.random.PRNGKey(0)
    kx, kp = jax.random.split(key)
    # EncoderUnit(conv_1_input_c=4, conv_1_output_c=8,
    #             conv_2_input_c=8, conv_2_output_c=8)
    x = jax.random.normal(kx, (2, 4, 16, 16), jnp.float32)
    params = init_params(kp)

    fwd = jax.jit(encoder_unit_forward)
    out = jax.block_until_ready(fwd(x, params))
    assert out.shape == (2, 8, 8, 8), out.shape      # 16 ->(pad,stride2) 8 -> 8
    assert bool(jnp.all(jnp.isfinite(out)))

    ref = jax.jit(_ref_forward)(x, params)
    # bf16 MXU operands -> ~1e-3..1e-2 deviation from the f32 reference.
    assert bool(jnp.allclose(out, ref, rtol=5e-2, atol=5e-2)), (
        float(jnp.max(jnp.abs(out - ref))))
    print("KERNEL_OK")
</pallas_src>

<mosaic_0001>
module attributes {stable_mosaic.version = 11 : i64} {
  func.func @_fused_conv_bn_lrelu_kernel(%arg0: i32, %arg1: memref<36x128xbf16, #tpu.memory_space<vmem>>, %arg2: memref<8x36xbf16, #tpu.memory_space<vmem>>, %arg3: memref<8x1xf32, #tpu.memory_space<vmem>>, %arg4: memref<8x1xf32, #tpu.memory_space<vmem>>, %arg5: memref<8x128xf32, #tpu.memory_space<vmem>>, %arg6: memref<8x1xf32, #tpu.memory_space<vmem>>, %arg7: memref<8x1xf32, #tpu.memory_space<vmem>>) attributes {dimension_semantics = [#tpu.dimension_semantics<arbitrary>], iteration_bounds = array<i64: 1>, scalar_prefetch = 0 : i64, scratch_operands = 2 : i64, tpu.core_type = #tpu.core_type<tc>, window_params = [{transform_indices = @transform_0, window_bounds = array<i64: 36, 128>}, {pipeline_mode = #tpu.pipeline_mode<synchronous>, transform_indices = @transform_1, window_bounds = array<i64: 8, 36>}, {pipeline_mode = #tpu.pipeline_mode<synchronous>, transform_indices = @transform_2, window_bounds = array<i64: 8, 1>}, {pipeline_mode = #tpu.pipeline_mode<synchronous>, transform_indices = @transform_3, window_bounds = array<i64: 8, 1>}, {pipeline_mode = #tpu.pipeline_mode<synchronous>, transform_indices = @transform_4, window_bounds = array<i64: 8, 128>}]} {
    %c0_i32 = arith.constant 0 : i32
    %0 = arith.cmpi eq, %arg0, %c0_i32 : i32
    %1 = arith.extui %0 : i1 to i32
    %c0_i32_0 = arith.constant 0 : i32
    %2 = arith.cmpi ne, %1, %c0_i32_0 : i32
    scf.if %2 {
      %cst_17 = arith.constant 0.000000e+00 : f32
      %24 = vector.broadcast %cst_17 : f32 to vector<8x1xf32>
      %c0_18 = arith.constant 0 : index
      %c0_19 = arith.constant 0 : index
      %25 = vector.load %arg6[%c0_18, %c0_19] : memref<8x1xf32, #tpu.memory_space<vmem>>, vector<8x1xf32>
      tpu.vector_store %arg6[%c0_18, %c0_19], %24 {strides = array<i32>} : memref<8x1xf32, #tpu.memory_space<vmem>>, vector<8x1xf32>,
      %cst_20 = arith.constant 0.000000e+00 : f32
      %26 = vector.broadcast %cst_20 : f32 to vector<8x1xf32>
      %c0_21 = arith.constant 0 : index
      %c0_22 = arith.constant 0 : index
      %27 = vector.load %arg7[%c0_21, %c0_22] : memref<8x1xf32, #tpu.memory_space<vmem>>, vector<8x1xf32>
      tpu.vector_store %arg7[%c0_21, %c0_22], %26 {strides = array<i32>} : memref<8x1xf32, #tpu.memory_space<vmem>>, vector<8x1xf32>,
    } else {
    }
    %c0 = arith.constant 0 : index
    %c0_1 = arith.constant 0 : index
    %3 = vector.load %arg2[%c0, %c0_1] : memref<8x36xbf16, #tpu.memory_space<vmem>>, vector<8x36xbf16>
    %c0_2 = arith.constant 0 : index
    %c0_3 = arith.constant 0 : index
    %4 = vector.load %arg1[%c0_2, %c0_3] : memref<36x128xbf16, #tpu.memory_space<vmem>>, vector<36x128xbf16>
    %cst = arith.constant dense<0.000000e+00> : vector<8x128xf32>
    %5 = tpu.matmul %3, %4, %cst {dimension_numbers = #tpu.dot_dimension_numbers<[1], [0], [0], [1], [0, 0, 1, 1], [], []>} : vector<8x36xbf16>, vector<36x128xbf16>, vector<8x128xf32> -> vector<8x128xf32>
    %c128_i32 = arith.constant 128 : i32
    %6 = arith.muli %arg0, %c128_i32 : i32
    %7 = tpu.assume_multiple %6, 128 : i32
    %c0_4 = arith.constant 0 : index
    %8 = arith.index_cast %7 : i32 to index
    %9 = vector.load %arg5[%c0_4, %8] : memref<8x128xf32, #tpu.memory_space<vmem>>, vector<8x128xf32>
    tpu.vector_store %arg5[%c0_4, %8], %5 {strides = array<i32>} : memref<8x128xf32, #tpu.memory_space<vmem>>, vector<8x128xf32>,
    %c0_5 = arith.constant 0 : index
    %c0_6 = arith.constant 0 : index
    %10 = vector.load %arg6[%c0_5, %c0_6] : memref<8x1xf32, #tpu.memory_space<vmem>>, vector<8x1xf32>
    %cst_7 = arith.constant dense<0.000000e+00> : vector<8xf32>
    %11 = vector.multi_reduction <add>, %5, %cst_7 [1] : vector<8x128xf32> to vector<8xf32>
    %12 = vector.shape_cast %11 : vector<8xf32> to vector<8x1xf32>
    %13 = arith.addf %10, %12 : vector<8x1xf32>
    %c0_8 = arith.constant 0 : index
    %c0_9 = arith.constant 0 : index
    %14 = vector.load %arg6[%c0_8, %c0_9] : memref<8x1xf32, #tpu.memory_space<vmem>>, vector<8x1xf32>
    tpu.vector_store %arg6[%c0_8, %c0_9], %13 {strides = array<i32>} : memref<8x1xf32, #tpu.memory_space<vmem>>, vector<8x1xf32>,
    %c0_10 = arith.constant 0 : index
    %c0_11 = arith.constant 0 : index
    %15 = vector.load %arg7[%c0_10, %c0_11] : memref<8x1xf32, #tpu.memory_space<vmem>>, vector<8x1xf32>
    %16 = arith.mulf %5, %5 : vector<8x128xf32>
    %cst_12 = arith.constant dense<0.000000e+00> : vector<8xf32>
    %17 = vector.multi_reduction <add>, %16, %cst_12 [1] : vector<8x128xf32> to vector<8xf32>
    %18 = vector.shape_cast %17 : vector<8xf32> to vector<8x1xf32>
    %19 = arith.addf %15, %18 : vector<8x1xf32>
    %c0_13 = arith.constant 0 : index
    %c0_14 = arith.constant 0 : index
    %20 = vector.load %arg7[%c0_13, %c0_14] : memref<8x1xf32, #tpu.memory_space<vmem>>, vector<8x1xf32>
    tpu.vector_store %arg7[%c0_13, %c0_14], %19 {strides = array<i32>} : memref<8x1xf32, #tpu.memory_space<vmem>>, vector<8x1xf32>,
    %c0_i32_15 = arith.constant 0 : i32
    %21 = arith.cmpi eq, %arg0, %c0_i32_15 : i32
    %22 = arith.extui %21 : i1 to i32
    %c0_i32_16 = arith.constant 0 : i32
    %23 = arith.cmpi ne, %22, %c0_i32_16 : i32
    scf.if %23 {
      %c0_17 = arith.constant 0 : index
      %c0_18 = arith.constant 0 : index
      %24 = vector.load %arg6[%c0_17, %c0_18] : memref<8x1xf32, #tpu.memory_space<vmem>>, vector<8x1xf32>
      %cst_19 = arith.constant 7.812500e-03 : f32
      %25 = vector.broadcast %cst_19 : f32 to vector<8x1xf32>
      %26 = arith.mulf %24, %25 : vector<8x1xf32>
      %c0_20 = arith.constant 0 : index
      %c0_21 = arith.constant 0 : index
      %27 = vector.load %arg7[%c0_20, %c0_21] : memref<8x1xf32, #tpu.memory_space<vmem>>, vector<8x1xf32>
      %cst_22 = arith.constant 7.812500e-03 : f32
      %28 = vector.broadcast %cst_22 : f32 to vector<8x1xf32>
      %29 = arith.mulf %27, %28 : vector<8x1xf32>
      %30 = arith.mulf %26, %26 : vector<8x1xf32>
      %31 = arith.subf %29, %30 : vector<8x1xf32>
      %cst_23 = arith.constant 0.000000e+00 : f32
      %32 = vector.broadcast %cst_23 : f32 to vector<8x1xf32>
      %33 = arith.maximumf %31, %32 : vector<8x1xf32>
      %c0_24 = arith.constant 0 : index
      %c0_25 = arith.constant 0 : index
      %34 = vector.load %arg3[%c0_24, %c0_25] : memref<8x1xf32, #tpu.memory_space<vmem>>, vector<8x1xf32>
      %cst_26 = arith.constant 9.99999974E-6 : f32
      %35 = vector.broadcast %cst_26 : f32 to vector<8x1xf32>
      %36 = arith.addf %33, %35 : vector<8x1xf32>
      %37 = math.rsqrt %36 : vector<8x1xf32>
      %38 = arith.mulf %34, %37 : vector<8x1xf32>
      %c0_27 = arith.constant 0 : index
      %c0_28 = arith.constant 0 : index
      %39 = vector.load %arg4[%c0_27, %c0_28] : memref<8x1xf32, #tpu.memory_space<vmem>>, vector<8x1xf32>
      %40 = arith.mulf %26, %38 : vector<8x1xf32>
      %41 = arith.subf %39, %40 : vector<8x1xf32>
      %c0_29 = arith.constant 0 : index
      %c0_30 = arith.constant 0 : index
      %42 = vector.load %arg5[%c0_29, %c0_30] : memref<8x128xf32, #tpu.memory_space<vmem>>, vector<8x128xf32>
      %43 = vector.broadcast %38 : vector<8x1xf32> to vector<8x128xf32>
      %44 = arith.mulf %42, %43 : vector<8x128xf32>
      %45 = vector.broadcast %41 : vector<8x1xf32> to vector<8x128xf32>
      %46 = arith.addf %44, %45 : vector<8x128xf32>
      %cst_31 = arith.constant 0.000000e+00 : f32
      %47 = vector.broadcast %cst_31 : f32 to vector<8x128xf32>
      %48 = arith.cmpf oge, %46, %47 : vector<8x128xf32>
      %cst_32 = arith.constant 2.000000e-01 : f32
      %49 = vector.broadcast %cst_32 : f32 to vector<8x128xf32>
      %50 = arith.mulf %49, %46 : vector<8x128xf32>
      %51 = arith.select %48, %46, %50 : vector<8x128xi1>, vector<8x128xf32>
      %c0_33 = arith.constant 0 : index
      %c0_34 = arith.constant 0 : index
      %52 = vector.load %arg5[%c0_33, %c0_34] : memref<8x128xf32, #tpu.memory_space<vmem>>, vector<8x128xf32>
      tpu.vector_store %arg5[%c0_33, %c0_34], %51 {strides = array<i32>} : memref<8x128xf32, #tpu.memory_space<vmem>>, vector<8x128xf32>,
    } else {
    }
    return
  }
  func.func @transform_0(%arg0: i32) -> (i32, i32) {
    %c0_i32 = arith.constant 0 : i32
    %c0_i32_0 = arith.constant 0 : i32
    return %c0_i32, %arg0 : i32, i32
  }
  func.func @transform_1(%arg0: i32) -> (i32, i32) {
    %c0_i32 = arith.constant 0 : i32
    %c0_i32_0 = arith.constant 0 : i32
    %c0_i32_1 = arith.constant 0 : i32
    return %c0_i32, %c0_i32_0 : i32, i32
  }
  func.func @transform_2(%arg0: i32) -> (i32, i32) {
    %c0_i32 = arith.constant 0 : i32
    %c0_i32_0 = arith.constant 0 : i32
    %c0_i32_1 = arith.constant 0 : i32
    return %c0_i32, %c0_i32_0 : i32, i32
  }
  func.func @transform_3(%arg0: i32) -> (i32, i32) {
    %c0_i32 = arith.constant 0 : i32
    %c0_i32_0 = arith.constant 0 : i32
    %c0_i32_1 = arith.constant 0 : i32
    return %c0_i32, %c0_i32_0 : i32, i32
  }
  func.func @transform_4(%arg0: i32) -> (i32, i32) {
    %c0_i32 = arith.constant 0 : i32
    %c0_i32_0 = arith.constant 0 : i32
    %c0_i32_1 = arith.constant 0 : i32
    return %c0_i32, %c0_i32_0 : i32, i32
  }
}

module attributes {stable_mosaic.version = 11 : i64} {
  func.func @_fused_conv_bn_lrelu_kernel(%arg0: i32, %arg1: memref<72x128xbf16, #tpu.memory_space<vmem>>, %arg2: memref<8x72xbf16, #tpu.memory_space<vmem>>, %arg3: memref<8x1xf32, #tpu.memory_space<vmem>>, %arg4: memref<8x1xf32, #tpu.memory_space<vmem>>, %arg5: memref<8x128xf32, #tpu.memory_space<vmem>>, %arg6: memref<8x1xf32, #tpu.memory_space<vmem>>, %arg7: memref<8x1xf32, #tpu.memory_space<vmem>>) attributes {dimension_semantics = [#tpu.dimension_semantics<arbitrary>], iteration_bounds = array<i64: 1>, scalar_prefetch = 0 : i64, scratch_operands = 2 : i64, tpu.core_type = #tpu.core_type<tc>, window_params = [{transform_indices = @transform_0, window_bounds = array<i64: 72, 128>}, {pipeline_mode = #tpu.pipeline_mode<synchronous>, transform_indices = @transform_1, window_bounds = array<i64: 8, 72>}, {pipeline_mode = #tpu.pipeline_mode<synchronous>, transform_indices = @transform_2, window_bounds = array<i64: 8, 1>}, {pipeline_mode = #tpu.pipeline_mode<synchronous>, transform_indices = @transform_3, window_bounds = array<i64: 8, 1>}, {pipeline_mode = #tpu.pipeline_mode<synchronous>, transform_indices = @transform_4, window_bounds = array<i64: 8, 128>}]} {
    %c0_i32 = arith.constant 0 : i32
    %0 = arith.cmpi eq, %arg0, %c0_i32 : i32
    %1 = arith.extui %0 : i1 to i32
    %c0_i32_0 = arith.constant 0 : i32
    %2 = arith.cmpi ne, %1, %c0_i32_0 : i32
    scf.if %2 {
      %cst_17 = arith.constant 0.000000e+00 : f32
      %24 = vector.broadcast %cst_17 : f32 to vector<8x1xf32>
      %c0_18 = arith.constant 0 : index
      %c0_19 = arith.constant 0 : index
      %25 = vector.load %arg6[%c0_18, %c0_19] : memref<8x1xf32, #tpu.memory_space<vmem>>, vector<8x1xf32>
      tpu.vector_store %arg6[%c0_18, %c0_19], %24 {strides = array<i32>} : memref<8x1xf32, #tpu.memory_space<vmem>>, vector<8x1xf32>,
      %cst_20 = arith.constant 0.000000e+00 : f32
      %26 = vector.broadcast %cst_20 : f32 to vector<8x1xf32>
      %c0_21 = arith.constant 0 : index
      %c0_22 = arith.constant 0 : index
      %27 = vector.load %arg7[%c0_21, %c0_22] : memref<8x1xf32, #tpu.memory_space<vmem>>, vector<8x1xf32>
      tpu.vector_store %arg7[%c0_21, %c0_22], %26 {strides = array<i32>} : memref<8x1xf32, #tpu.memory_space<vmem>>, vector<8x1xf32>,
    } else {
    }
    %c0 = arith.constant 0 : index
    %c0_1 = arith.constant 0 : index
    %3 = vector.load %arg2[%c0, %c0_1] : memref<8x72xbf16, #tpu.memory_space<vmem>>, vector<8x72xbf16>
    %c0_2 = arith.constant 0 : index
    %c0_3 = arith.constant 0 : index
    %4 = vector.load %arg1[%c0_2, %c0_3] : memref<72x128xbf16, #tpu.memory_space<vmem>>, vector<72x128xbf16>
    %cst = arith.constant dense<0.000000e+00> : vector<8x128xf32>
    %5 = tpu.matmul %3, %4, %cst {dimension_numbers = #tpu.dot_dimension_numbers<[1], [0], [0], [1], [0, 0, 1, 1], [], []>} : vector<8x72xbf16>, vector<72x128xbf16>, vector<8x128xf32> -> vector<8x128xf32>
    %c128_i32 = arith.constant 128 : i32
    %6 = arith.muli %arg0, %c128_i32 : i32
    %7 = tpu.assume_multiple %6, 128 : i32
    %c0_4 = arith.constant 0 : index
    %8 = arith.index_cast %7 : i32 to index
    %9 = vector.load %arg5[%c0_4, %8] : memref<8x128xf32, #tpu.memory_space<vmem>>, vector<8x128xf32>
    tpu.vector_store %arg5[%c0_4, %8], %5 {strides = array<i32>} : memref<8x128xf32, #tpu.memory_space<vmem>>, vector<8x128xf32>,
    %c0_5 = arith.constant 0 : index
    %c0_6 = arith.constant 0 : index
    %10 = vector.load %arg6[%c0_5, %c0_6] : memref<8x1xf32, #tpu.memory_space<vmem>>, vector<8x1xf32>
    %cst_7 = arith.constant dense<0.000000e+00> : vector<8xf32>
    %11 = vector.multi_reduction <add>, %5, %cst_7 [1] : vector<8x128xf32> to vector<8xf32>
    %12 = vector.shape_cast %11 : vector<8xf32> to vector<8x1xf32>
    %13 = arith.addf %10, %12 : vector<8x1xf32>
    %c0_8 = arith.constant 0 : index
    %c0_9 = arith.constant 0 : index
    %14 = vector.load %arg6[%c0_8, %c0_9] : memref<8x1xf32, #tpu.memory_space<vmem>>, vector<8x1xf32>
    tpu.vector_store %arg6[%c0_8, %c0_9], %13 {strides = array<i32>} : memref<8x1xf32, #tpu.memory_space<vmem>>, vector<8x1xf32>,
    %c0_10 = arith.constant 0 : index
    %c0_11 = arith.constant 0 : index
    %15 = vector.load %arg7[%c0_10, %c0_11] : memref<8x1xf32, #tpu.memory_space<vmem>>, vector<8x1xf32>
    %16 = arith.mulf %5, %5 : vector<8x128xf32>
    %cst_12 = arith.constant dense<0.000000e+00> : vector<8xf32>
    %17 = vector.multi_reduction <add>, %16, %cst_12 [1] : vector<8x128xf32> to vector<8xf32>
    %18 = vector.shape_cast %17 : vector<8xf32> to vector<8x1xf32>
    %19 = arith.addf %15, %18 : vector<8x1xf32>
    %c0_13 = arith.constant 0 : index
    %c0_14 = arith.constant 0 : index
    %20 = vector.load %arg7[%c0_13, %c0_14] : memref<8x1xf32, #tpu.memory_space<vmem>>, vector<8x1xf32>
    tpu.vector_store %arg7[%c0_13, %c0_14], %19 {strides = array<i32>} : memref<8x1xf32, #tpu.memory_space<vmem>>, vector<8x1xf32>,
    %c0_i32_15 = arith.constant 0 : i32
    %21 = arith.cmpi eq, %arg0, %c0_i32_15 : i32
    %22 = arith.extui %21 : i1 to i32
    %c0_i32_16 = arith.constant 0 : i32
    %23 = arith.cmpi ne, %22, %c0_i32_16 : i32
    scf.if %23 {
      %c0_17 = arith.constant 0 : index
      %c0_18 = arith.constant 0 : index
      %24 = vector.load %arg6[%c0_17, %c0_18] : memref<8x1xf32, #tpu.memory_space<vmem>>, vector<8x1xf32>
      %cst_19 = arith.constant 7.812500e-03 : f32
      %25 = vector.broadcast %cst_19 : f32 to vector<8x1xf32>
      %26 = arith.mulf %24, %25 : vector<8x1xf32>
      %c0_20 = arith.constant 0 : index
      %c0_21 = arith.constant 0 : index
      %27 = vector.load %arg7[%c0_20, %c0_21] : memref<8x1xf32, #tpu.memory_space<vmem>>, vector<8x1xf32>
      %cst_22 = arith.constant 7.812500e-03 : f32
      %28 = vector.broadcast %cst_22 : f32 to vector<8x1xf32>
      %29 = arith.mulf %27, %28 : vector<8x1xf32>
      %30 = arith.mulf %26, %26 : vector<8x1xf32>
      %31 = arith.subf %29, %30 : vector<8x1xf32>
      %cst_23 = arith.constant 0.000000e+00 : f32
      %32 = vector.broadcast %cst_23 : f32 to vector<8x1xf32>
      %33 = arith.maximumf %31, %32 : vector<8x1xf32>
      %c0_24 = arith.constant 0 : index
      %c0_25 = arith.constant 0 : index
      %34 = vector.load %arg3[%c0_24, %c0_25] : memref<8x1xf32, #tpu.memory_space<vmem>>, vector<8x1xf32>
      %cst_26 = arith.constant 9.99999974E-6 : f32
      %35 = vector.broadcast %cst_26 : f32 to vector<8x1xf32>
      %36 = arith.addf %33, %35 : vector<8x1xf32>
      %37 = math.rsqrt %36 : vector<8x1xf32>
      %38 = arith.mulf %34, %37 : vector<8x1xf32>
      %c0_27 = arith.constant 0 : index
      %c0_28 = arith.constant 0 : index
      %39 = vector.load %arg4[%c0_27, %c0_28] : memref<8x1xf32, #tpu.memory_space<vmem>>, vector<8x1xf32>
      %40 = arith.mulf %26, %38 : vector<8x1xf32>
      %41 = arith.subf %39, %40 : vector<8x1xf32>
      %c0_29 = arith.constant 0 : index
      %c0_30 = arith.constant 0 : index
      %42 = vector.load %arg5[%c0_29, %c0_30] : memref<8x128xf32, #tpu.memory_space<vmem>>, vector<8x128xf32>
      %43 = vector.broadcast %38 : vector<8x1xf32> to vector<8x128xf32>
      %44 = arith.mulf %42, %43 : vector<8x128xf32>
      %45 = vector.broadcast %41 : vector<8x1xf32> to vector<8x128xf32>
      %46 = arith.addf %44, %45 : vector<8x128xf32>
      %cst_31 = arith.constant 0.000000e+00 : f32
      %47 = vector.broadcast %cst_31 : f32 to vector<8x128xf32>
      %48 = arith.cmpf oge, %46, %47 : vector<8x128xf32>
      %cst_32 = arith.constant 2.000000e-01 : f32
      %49 = vector.broadcast %cst_32 : f32 to vector<8x128xf32>
      %50 = arith.mulf %49, %46 : vector<8x128xf32>
      %51 = arith.select %48, %46, %50 : vector<8x128xi1>, vector<8x128xf32>
      %c0_33 = arith.constant 0 : index
      %c0_34 = arith.constant 0 : index
      %52 = vector.load %arg5[%c0_33, %c0_34] : memref<8x128xf32, #tpu.memory_space<vmem>>, vector<8x128xf32>
      tpu.vector_store %arg5[%c0_33, %c0_34], %51 {strides = array<i32>} : memref<8x128xf32, #tpu.memory_space<vmem>>, vector<8x128xf32>,
    } else {
    }
    return
  }
  func.func @transform_0(%arg0: i32) -> (i32, i32) {
    %c0_i32 = arith.constant 0 : i32
    %c0_i32_0 = arith.constant 0 : i32
    return %c0_i32, %arg0 : i32, i32
  }
  func.func @transform_1(%arg0: i32) -> (i32, i32) {
    %c0_i32 = arith.constant 0 : i32
    %c0_i32_0 = arith.constant 0 : i32
    %c0_i32_1 = arith.constant 0 : i32
    return %c0_i32, %c0_i32_0 : i32, i32
  }
  func.func @transform_2(%arg0: i32) -> (i32, i32) {
    %c0_i32 = arith.constant 0 : i32
    %c0_i32_0 = arith.constant 0 : i32
    %c0_i32_1 = arith.constant 0 : i32
    return %c0_i32, %c0_i32_0 : i32, i32
  }
  func.func @transform_3(%arg0: i32) -> (i32, i32) {
    %c0_i32 = arith.constant 0 : i32
    %c0_i32_0 = arith.constant 0 : i32
    %c0_i32_1 = arith.constant 0 : i32
    return %c0_i32, %c0_i32_0 : i32, i32
  }
  func.func @transform_4(%arg0: i32) -> (i32, i32) {
    %c0_i32 = arith.constant 0 : i32
    %c0_i32_0 = arith.constant 0 : i32
    %c0_i32_1 = arith.constant 0 : i32
    return %c0_i32, %c0_i32_0 : i32, i32
  }
}

</mosaic_0001>

<llo_original>
// kernel: encoder_unit_forward.2
$region0: #{encoder_unit_forward.2}
  #allocation0 [shape = 'u32[]', space=smem, size = 0x4, offset = 0x4, fixed_abs, tag = 'smem constant byte address 0x4 - core index']
  #allocation1 [shape = 'u32[144,128]{1,0:T(1,128)}', space=vmem, size = 0x12000, scoped, tag = 'internal scratch']
  #allocation2 [shape = 'f32[8,1]{1,0:T(8,128)}', space=vmem, size = 0x1000, scoped, tag = 'scratch operand']
  #allocation3 [shape = 'f32[8,1]{1,0:T(8,128)}', space=vmem, size = 0x1000, scoped, tag = 'scratch operand']
  %s0 = inlined_call_operand.vmem [shape: bf16[36,128], index: 0, kind: input, shape index: {}]
  %s1 = inlined_call_operand.vmem [shape: bf16[8,36], index: 1, kind: input, shape index: {}]
  %s2 = inlined_call_operand.vmem [shape: f32[8,1], index: 2, kind: input, shape index: {}]
  %s3 = inlined_call_operand.vmem [shape: f32[8,1], index: 3, kind: input, shape index: {}]
  %s4 = inlined_call_operand.vmem [shape: f32[8,128], index: 4, kind: output, shape index: {}]
  %s5 = sld [smem:[#allocation0]]
  $region34: #{encoder_unit_forward.2} parent=0
    _
  %s7 = ssub.s32 1, %s5
  %s8 = scalar_select 0, %s7, %s5
  // Predicated region
  $region2: #{encoder_unit_forward.2} parent=0 // pred_check
    _
  $region3: #{encoder_unit_forward.2} parent=0 // pred_check_branch
    %10 = sbr.rel (0) target = $region5
  $region4: #{encoder_unit_forward.2} parent=0 // pred_region
    _
  $region5: #{encoder_unit_forward.2} parent=0 // pred_fallthru
    _
  // Predicated region
  $region6: #{encoder_unit_forward.2} parent=0 // pred_check
    _
  $region7: #{encoder_unit_forward.2} parent=0 // pred_check_branch
    %12 = sbr.rel (0) target = $region9
  $region8: #{encoder_unit_forward.2} parent=0 // pred_region
    _
  $region9: #{encoder_unit_forward.2} parent=0 // pred_fallthru
    _
  // Predicated region
  $region10: #{encoder_unit_forward.2} parent=0 // pred_check
    _
  $region11: #{encoder_unit_forward.2} parent=0 // pred_check_branch
    %14 = sbr.rel (0) target = $region13
  $region12: #{encoder_unit_forward.2} parent=0 // pred_region
    _
  $region13: #{encoder_unit_forward.2} parent=0 // pred_fallthru
    _
  // Predicated region
  $region14: #{encoder_unit_forward.2} parent=0 // pred_check
    _
  $region15: #{encoder_unit_forward.2} parent=0 // pred_check_branch
    %16 = sbr.rel (0) target = $region17
  $region16: #{encoder_unit_forward.2} parent=0 // pred_region
    _
  $region17: #{encoder_unit_forward.2} parent=0 // pred_fallthru
    _
  %p18 = scmp.eq.s32.totalorder 0, 0
  // Predicated region
  $region18: #{encoder_unit_forward.2} parent=0 // pred_check
    %p19 = pneg %p18
  $region19: #{encoder_unit_forward.2} parent=0 // pred_check_branch
    %21 = sbr.rel (%p19) target = $region21
  $region20: #{encoder_unit_forward.2} parent=0 // pred_region
    %vm22 = vcmask 7168
    %23 = vst.msk [vmem:[#allocation2] sm:$0xff] %vm22, 0.0
    %24 = vst.msk [vmem:[#allocation3] sm:$0xff] %vm22, 0.0
  $region21: #{encoder_unit_forward.2} parent=0 // pred_fallthru
    _
  %v25 = vld [vmem:[%s1] sm:$0xf]
  %v26 = vld [vmem:[%s0] sm:$0xf]
  %v27 = vld [vmem:[%s0 + $0x4] sm:$0xf]
  %v28 = vld [vmem:[%s0 + $0x8] sm:$0xf]
  %v29 = vld [vmem:[%s0 + $0xc] sm:$0xf]
  %v30 = vld [vmem:[%s0 + $0x10] sm:$0x3]
  %v36 = vunpack.c.l.b16 %v26
  %v37 = vunpack.c.l.b16 %v27
  %v38 = vunpack.c.l.b16 %v28
  %v39 = vunpack.c.l.b16 %v29
  %v40 = vunpack.c.l.b16 %v30
  %v41 = vpack.c.b16 %v37, %v36
  %v42 = vpack.c.b16 %v39, %v38
  %v43 = vpack.c.b16 %v40, %v40
  %vm46 = vcmask 293888
  %v48 = vsel %vm46, %v25, 0
  %vm50 = vcmask 1041408
  %v52 = vsel %vm50, %v43, 0
  %54 = vmatprep.subr.bf16.mxu0 0
  %55 = vmatpush1.bf16.msra.mxu0 0
  %56 = vmatprep.subr.bf16.mxu0 0
  %57 = vmatpush1.bf16.msra.mxu0 0
  %58 = vmatprep.subr.bf16.mxu0 0
  %59 = vmatpush1.bf16.msra.mxu0 0
  %60 = vmatprep.subr.bf16.mxu0 0
  %61 = vmatpush1.bf16.msra.mxu0 0
  %62 = vmatprep.subr.bf16.mxu0 0
  %63 = vmatpush1.bf16.msra.mxu0 0
  %64 = vmatprep.subr.bf16.mxu0 0
  %65 = vmatpush1.bf16.msra.mxu0 %v52
  %66 = vmatprep.subr.bf16.mxu0 0
  %67 = vmatpush1.bf16.msra.mxu0 %v42
  %68 = vmatprep.subr.bf16.mxu0 0
  %69 = vmatpush1.bf16.msra.mxu0 %v41
  %70 = vmatprep.subr.bf16.mxu0 0
  %71 = vmatpush2.bf16.msra.mxu0 0
  %72 = vmatprep.subr.bf16.mxu0 0
  %73 = vmatpush2.bf16.msra.mxu0 0
  %74 = vmatprep.subr.bf16.mxu0 0
  %75 = vmatpush2.bf16.msra.mxu0 0
  %76 = vmatprep.subr.bf16.mxu0 0
  %77 = vmatpush2.bf16.msra.mxu0 0
  %78 = vmatprep.subr.bf16.mxu0 0
  %79 = vmatpush2.bf16.msra.mxu0 0
  %80 = vmatprep.subr.bf16.mxu0 0
  %81 = vmatpush2.bf16.msra.mxu0 0
  %82 = vmatprep.subr.bf16.mxu0 0
  %83 = vmatpush2.bf16.msra.mxu0 0
  %84 = vmatprep.subr.bf16.mxu0 0
  %85 = vmatpush2.bf16.msra.mxu0 0
  %86 = vmatprep.mubr.bf16.mxu0 0
  %87 = vmatmul.mubr.bf16.gmra.mxu0 %v48
  %v88 = vpop.f32.mrf.mxu0
  %v89 = vadd.f32 0.0, %v88
  %v90 = vpop.f32.mrf.mxu0
  %v91 = vpop.f32.mrf.mxu0
  %v92 = vpop.f32.mrf.mxu0
  %93 = vdwg.mxu0
  %s94 = smul.u32 0, 128
  %s95 = sshra.s32 %s94, 7
  %s96 = sand.u32 %s94, 127
  %s97 = scalar_lea.vmem %s4, %s95
  %98 = vst [vmem:[%s97] sm:$0xff] %v89
  %v99 = vld [vmem:[#allocation2] sm:$0xff]
  %100 = vadd.xlane.f32.xlu0 %v89
  %v101 = vpop.xlane.xlu0 %100
  %v102 = vadd.f32 %v99, %v101
  %vm103 = vcmask 7168
  %104 = vst.msk [vmem:[#allocation2] sm:$0xff] %vm103, %v102
  %v105 = vld [vmem:[#allocation3] sm:$0xff]
  %v106 = vmul.f32 %v89, %v89
  %107 = vadd.xlane.f32.xlu0 %v106
  %v108 = vpop.xlane.xlu0 %107
  %v109 = vadd.f32 %v105, %v108
  %110 = vst.msk [vmem:[#allocation3] sm:$0xff] %vm103, %v109
  // Predicated region
  $region22: #{encoder_unit_forward.2} parent=0 // pred_check
    %p111 = pneg %p18
  $region23: #{encoder_unit_forward.2} parent=0 // pred_check_branch
    %113 = sbr.rel (%p111) target = $region25
  $region24: #{encoder_unit_forward.2} parent=0 // pred_region
    %v114 = vld [vmem:[#allocation2] sm:$0xff]
    %v115 = vmul.f32 %v114, 0.0078125
    %v116 = vld [vmem:[#allocation3] sm:$0xff]
    %v117 = vmul.f32 %v116, 0.0078125
    %v118 = vmul.f32 %v115, %v115
    %v119 = vsub.f32 %v117, %v118
    %v120 = vmax.f32 %v119, 0.0
    %v121 = vld [vmem:[%s2] sm:$0xff]
    %v122 = vadd.f32 %v120, 1e-05
    %v123 = vrsqrt.pop %v122
    %v124 = vmul.f32 %v121, %v123
    %v125 = vld [vmem:[%s3] sm:$0xff]
    %v126 = vmul.f32 %v115, %v124
    %v127 = vsub.f32 %v125, %v126
    %v128 = vld [vmem:[%s4] sm:$0xff]
    %130 = vset.pattern.permute.xlu0 0
    %131 = vperm.xlu0 %130, %v124
    %v132 = vpop.permute.xlu0 %131
    %v134 = vmul.f32 %v128, %v132
    %136 = vset.pattern.permute.xlu0 0
    %137 = vperm.xlu0 %136, %v127
    %v138 = vpop.permute.xlu0 %137
    %v140 = vadd.f32 %v134, %v138
    %vm141 = vcmp.ge.f32.partialorder %v140, 0.0
    %v142 = vmul.f32 %v140, 0.2
    %v143 = vsel %vm141, %v140, %v142
    %144 = vst [vmem:[%s4] sm:$0xff] %v143
  $region25: #{encoder_unit_forward.2} parent=0 // pred_fallthru
    _
  // Predicated region
  $region26: #{encoder_unit_forward.2} parent=0 // pred_check
    _
  $region27: #{encoder_unit_forward.2} parent=0 // pred_check_branch
    %146 = sbr.rel (0) target = $region29
  $region28: #{encoder_unit_forward.2} parent=0 // pred_region
    _
  $region29: #{encoder_unit_forward.2} parent=0 // pred_fallthru
    _
  // Predicated region
  $region30: #{encoder_unit_forward.2} parent=0 // pred_check
    _
  $region31: #{encoder_unit_forward.2} parent=0 // pred_check_branch
    %148 = sbr.rel (0) target = $region33
  $region32: #{encoder_unit_forward.2} parent=0 // pred_region
    _
  $region33: #{encoder_unit_forward.2} parent=0 // pred_fallthru
    _

// kernel: encoder_unit_forward.3
$region0: #{encoder_unit_forward.3}
  #allocation0 [shape = 'u32[]', space=smem, size = 0x4, offset = 0x4, fixed_abs, tag = 'smem constant byte address 0x4 - core index']
  #allocation1 [shape = 'u32[144,128]{1,0:T(1,128)}', space=vmem, size = 0x12000, scoped, tag = 'internal scratch']
  #allocation2 [shape = 'f32[8,1]{1,0:T(8,128)}', space=vmem, size = 0x1000, scoped, tag = 'scratch operand']
  #allocation3 [shape = 'f32[8,1]{1,0:T(8,128)}', space=vmem, size = 0x1000, scoped, tag = 'scratch operand']
  %s0 = inlined_call_operand.vmem [shape: bf16[72,128], index: 0, kind: input, shape index: {}]
  %s1 = inlined_call_operand.vmem [shape: bf16[8,72], index: 1, kind: input, shape index: {}]
  %s2 = inlined_call_operand.vmem [shape: f32[8,1], index: 2, kind: input, shape index: {}]
  %s3 = inlined_call_operand.vmem [shape: f32[8,1], index: 3, kind: input, shape index: {}]
  %s4 = inlined_call_operand.vmem [shape: f32[8,128], index: 4, kind: output, shape index: {}]
  %s5 = sld [smem:[#allocation0]]
  $region34: #{encoder_unit_forward.3} parent=0
    _
  %s7 = ssub.s32 1, %s5
  %s8 = scalar_select 0, %s7, %s5
  // Predicated region
  $region2: #{encoder_unit_forward.3} parent=0 // pred_check
    _
  $region3: #{encoder_unit_forward.3} parent=0 // pred_check_branch
    %10 = sbr.rel (0) target = $region5
  $region4: #{encoder_unit_forward.3} parent=0 // pred_region
    _
  $region5: #{encoder_unit_forward.3} parent=0 // pred_fallthru
    _
  // Predicated region
  $region6: #{encoder_unit_forward.3} parent=0 // pred_check
    _
  $region7: #{encoder_unit_forward.3} parent=0 // pred_check_branch
    %12 = sbr.rel (0) target = $region9
  $region8: #{encoder_unit_forward.3} parent=0 // pred_region
    _
  $region9: #{encoder_unit_forward.3} parent=0 // pred_fallthru
    _
  // Predicated region
  $region10: #{encoder_unit_forward.3} parent=0 // pred_check
    _
  $region11: #{encoder_unit_forward.3} parent=0 // pred_check_branch
    %14 = sbr.rel (0) target = $region13
  $region12: #{encoder_unit_forward.3} parent=0 // pred_region
    _
  $region13: #{encoder_unit_forward.3} parent=0 // pred_fallthru
    _
  // Predicated region
  $region14: #{encoder_unit_forward.3} parent=0 // pred_check
    _
  $region15: #{encoder_unit_forward.3} parent=0 // pred_check_branch
    %16 = sbr.rel (0) target = $region17
  $region16: #{encoder_unit_forward.3} parent=0 // pred_region
    _
  $region17: #{encoder_unit_forward.3} parent=0 // pred_fallthru
    _
  %p18 = scmp.eq.s32.totalorder 0, 0
  // Predicated region
  $region18: #{encoder_unit_forward.3} parent=0 // pred_check
    %p19 = pneg %p18
  $region19: #{encoder_unit_forward.3} parent=0 // pred_check_branch
    %21 = sbr.rel (%p19) target = $region21
  $region20: #{encoder_unit_forward.3} parent=0 // pred_region
    %vm22 = vcmask 7168
    %23 = vst.msk [vmem:[#allocation2] sm:$0xff] %vm22, 0.0
    %24 = vst.msk [vmem:[#allocation3] sm:$0xff] %vm22, 0.0
  $region21: #{encoder_unit_forward.3} parent=0 // pred_fallthru
    _
  %v25 = vld [vmem:[%s1] sm:$0xf]
  %v26 = vld [vmem:[%s0] sm:$0xf]
  %v27 = vld [vmem:[%s0 + $0x4] sm:$0xf]
  %v28 = vld [vmem:[%s0 + $0x8] sm:$0xf]
  %v29 = vld [vmem:[%s0 + $0xc] sm:$0xf]
  %v30 = vld [vmem:[%s0 + $0x10] sm:$0xf]
  %v31 = vld [vmem:[%s0 + $0x14] sm:$0xf]
  %v32 = vld [vmem:[%s0 + $0x18] sm:$0xf]
  %v33 = vld [vmem:[%s0 + $0x1c] sm:$0xf]
  %v34 = vld [vmem:[%s0 + $0x20] sm:$0xf]
  %v44 = vunpack.c.l.b16 %v26
  %v45 = vunpack.c.l.b16 %v27
  %v46 = vunpack.c.l.b16 %v28
  %v47 = vunpack.c.l.b16 %v29
  %v48 = vunpack.c.l.b16 %v30
  %v49 = vunpack.c.l.b16 %v31
  %v50 = vunpack.c.l.b16 %v32
  %v51 = vunpack.c.l.b16 %v33
  %v52 = vunpack.c.l.b16 %v34
  %v53 = vpack.c.b16 %v45, %v44
  %v54 = vpack.c.b16 %v47, %v46
  %v55 = vpack.c.b16 %v49, %v48
  %v56 = vpack.c.b16 %v51, %v50
  %v57 = vpack.c.b16 %v52, %v52
  %vm62 = vcmask 588800
  %v64 = vsel %vm62, %v25, 0
  %vm66 = vcmask 1043456
  %v68 = vsel %vm66, %v57, 0
  %70 = vmatprep.subr.bf16.mxu0 0
  %71 = vmatpush1.bf16.msra.mxu0 0
  %72 = vmatprep.subr.bf16.mxu0 0
  %73 = vmatpush1.bf16.msra.mxu0 0
  %74 = vmatprep.subr.bf16.mxu0 0
  %75 = vmatpush1.bf16.msra.mxu0 0
  %76 = vmatprep.subr.bf16.mxu0 0
  %77 = vmatpush1.bf16.msra.mxu0 %v68
  %78 = vmatprep.subr.bf16.mxu0 0
  %79 = vmatpush1.bf16.msra.mxu0 %v56
  %80 = vmatprep.subr.bf16.mxu0 0
  %81 = vmatpush1.bf16.msra.mxu0 %v55
  %82 = vmatprep.subr.bf16.mxu0 0
  %83 = vmatpush1.bf16.msra.mxu0 %v54
  %84 = vmatprep.subr.bf16.mxu0 0
  %85 = vmatpush1.bf16.msra.mxu0 %v53
  %86 = vmatprep.subr.bf16.mxu0 0
  %87 = vmatpush2.bf16.msra.mxu0 0
  %88 = vmatprep.subr.bf16.mxu0 0
  %89 = vmatpush2.bf16.msra.mxu0 0
  %90 = vmatprep.subr.bf16.mxu0 0
  %91 = vmatpush2.bf16.msra.mxu0 0
  %92 = vmatprep.subr.bf16.mxu0 0
  %93 = vmatpush2.bf16.msra.mxu0 0
  %94 = vmatprep.subr.bf16.mxu0 0
  %95 = vmatpush2.bf16.msra.mxu0 0
  %96 = vmatprep.subr.bf16.mxu0 0
  %97 = vmatpush2.bf16.msra.mxu0 0
  %98 = vmatprep.subr.bf16.mxu0 0
  %99 = vmatpush2.bf16.msra.mxu0 0
  %100 = vmatprep.subr.bf16.mxu0 0
  %101 = vmatpush2.bf16.msra.mxu0 0
  %102 = vmatprep.mubr.bf16.mxu0 0
  %103 = vmatmul.mubr.bf16.gmra.mxu0 %v64
  %v104 = vpop.f32.mrf.mxu0
  %v105 = vadd.f32 0.0, %v104
  %v106 = vpop.f32.mrf.mxu0
  %v107 = vpop.f32.mrf.mxu0
  %v108 = vpop.f32.mrf.mxu0
  %109 = vdwg.mxu0
  %s110 = smul.u32 0, 128
  %s111 = sshra.s32 %s110, 7
  %s112 = sand.u32 %s110, 127
  %s113 = scalar_lea.vmem %s4, %s111
  %114 = vst [vmem:[%s113] sm:$0xff] %v105
  %v115 = vld [vmem:[#allocation2] sm:$0xff]
  %116 = vadd.xlane.f32.xlu0 %v105
  %v117 = vpop.xlane.xlu0 %116
  %v118 = vadd.f32 %v115, %v117
  %vm119 = vcmask 7168
  %120 = vst.msk [vmem:[#allocation2] sm:$0xff] %vm119, %v118
  %v121 = vld [vmem:[#allocation3] sm:$0xff]
  %v122 = vmul.f32 %v105, %v105
  %123 = vadd.xlane.f32.xlu0 %v122
  %v124 = vpop.xlane.xlu0 %123
  %v125 = vadd.f32 %v121, %v124
  %126 = vst.msk [vmem:[#allocation3] sm:$0xff] %vm119, %v125
  // Predicated region
  $region22: #{encoder_unit_forward.3} parent=0 // pred_check
    %p127 = pneg %p18
  $region23: #{encoder_unit_forward.3} parent=0 // pred_check_branch
    %129 = sbr.rel (%p127) target = $region25
  $region24: #{encoder_unit_forward.3} parent=0 // pred_region
    %v130 = vld [vmem:[#allocation2] sm:$0xff]
    %v131 = vmul.f32 %v130, 0.0078125
    %v132 = vld [vmem:[#allocation3] sm:$0xff]
    %v133 = vmul.f32 %v132, 0.0078125
    %v134 = vmul.f32 %v131, %v131
    %v135 = vsub.f32 %v133, %v134
    %v136 = vmax.f32 %v135, 0.0
    %v137 = vld [vmem:[%s2] sm:$0xff]
    %v138 = vadd.f32 %v136, 1e-05
    %v139 = vrsqrt.pop %v138
    %v140 = vmul.f32 %v137, %v139
    %v141 = vld [vmem:[%s3] sm:$0xff]
    %v142 = vmul.f32 %v131, %v140
    %v143 = vsub.f32 %v141, %v142
    %v144 = vld [vmem:[%s4] sm:$0xff]
    %146 = vset.pattern.permute.xlu0 0
    %147 = vperm.xlu0 %146, %v140
    %v148 = vpop.permute.xlu0 %147
    %v150 = vmul.f32 %v144, %v148
    %152 = vset.pattern.permute.xlu0 0
    %153 = vperm.xlu0 %152, %v143
    %v154 = vpop.permute.xlu0 %153
    %v156 = vadd.f32 %v150, %v154
    %vm157 = vcmp.ge.f32.partialorder %v156, 0.0
    %v158 = vmul.f32 %v156, 0.2
    %v159 = vsel %vm157, %v156, %v158
    %160 = vst [vmem:[%s4] sm:$0xff] %v159
  $region25: #{encoder_unit_forward.3} parent=0 // pred_fallthru
    _
  // Predicated region
  $region26: #{encoder_unit_forward.3} parent=0 // pred_check
    _
  $region27: #{encoder_unit_forward.3} parent=0 // pred_check_branch
    %162 = sbr.rel (0) target = $region29
  $region28: #{encoder_unit_forward.3} parent=0 // pred_region
    _
  $region29: #{encoder_unit_forward.3} parent=0 // pred_fallthru
    _
  // Predicated region
  $region30: #{encoder_unit_forward.3} parent=0 // pred_check
    _
  $region31: #{encoder_unit_forward.3} parent=0 // pred_check_branch
    %164 = sbr.rel (0) target = $region33
  $region32: #{encoder_unit_forward.3} parent=0 // pred_region
    _
  $region33: #{encoder_unit_forward.3} parent=0 // pred_fallthru
    _

</llo_original>
